<compile_context>
chip_gen: v7x
topology: tpu7x:2x2x1
jax: 0.10.0
libtpu: 0.0.40
codegen_flags: <defaults>
</compile_context>

<pallas_src>
import jax
import jax.numpy as jnp
from jax import lax
from jax.experimental import pallas as pl
from jax.experimental.pallas import tpu as pltpu


def _build_lstm_kernel(L, H, out_size, r_whh, r_seq, r_wih, r_bias, r_wlin, r_blin):
    """Kernel specialized (closure) on static sizes and slab row offsets."""

    def lstm_kernel(slab_ref, out_ref, state_ref):
        # ---- hoisted, loop-invariant loads (single packed slab -> vregs) ----
        whh  = slab_ref[r_whh:r_whh + H, :]     # (H, 4H) recurrent weight, i/f/o cols pre-scaled by 0.5
        xrow = slab_ref[r_seq:r_seq + L, :]     # (L, 4H) x_t broadcast across lanes
        wih  = slab_ref[r_wih:r_wih + 1, :]     # (1, 4H) input weight row (pre-scaled)
        bias = slab_ref[r_bias:r_bias + 1, :]   # (1, 4H) combined bias (pre-scaled)

        # Input projection + bias for ALL timesteps in one VPU op region
        # ((L, 4H) = exactly one f32 vreg for L=8, H=32); stays vreg-resident.
        pre = xrow * wih + bias                 # (L, 4H)

        h = jnp.zeros((1, H), jnp.float32)
        c = jnp.zeros((1, H), jnp.float32)

        # Fully-unrolled straight-line recurrence (L is a Python int): the
        # pre[t] slices are static sublane offsets, and `whh` is a single
        # loop-invariant MXU RHS Mosaic can keep staged across the steps.
        for t in range(L):
            # The only MXU matmul on the serial h -> h chain.
            rec = jnp.dot(h, whh, preferred_element_type=jnp.float32)   # (1, 4H)
            z = rec + pre[t:t + 1, :]
            # ONE EUP pass over all four gates.  sigmoid(x)=0.5*tanh(x/2)+0.5;
            # the 1/2 pre-scale is already folded into the i/f/o weight lanes,
            # so only a scalar-constant affine remains per gate slice.
            a = jnp.tanh(z)
            i = 0.5 * a[:, 0 * H:1 * H] + 0.5
            f = 0.5 * a[:, 1 * H:2 * H] + 0.5
            g =       a[:, 2 * H:3 * H]
            o = 0.5 * a[:, 3 * H:4 * H] + 0.5
            c = f * c + i * g
            h = o * jnp.tanh(c)                 # second (and last) EUP pass this step

        # Epilogue: Linear(h_T) as VPU multiply + lane reduce (avoids a second
        # MXU weight push/drain for a 1-element result on the kernel tail).
        wlin = slab_ref[r_wlin:r_wlin + 1, :]   # (1, 4H), first H lanes valid
        blin = slab_ref[r_blin:r_blin + 1, :]   # (1, 4H), first out_size lanes valid
        out_ref[...] = (jnp.sum(h * wlin[:, 0:H], axis=-1, keepdims=True)
                        + blin[:, 0:out_size])

        # Final LSTM state so callers can reproduce the PyTorch module's
        # stateful self.hidden carry across forward() calls.
        state_ref[0:1, :] = h
        state_ref[1:2, :] = c

    return lstm_kernel


def lstm_network_forward(seq, params):
    """seq: (L, 1) f32.  Returns (pred, (h_T, c_T)); pred is equivalent to
    PyTorch LSTMnetwork.forward(seq) with zero initial hidden state."""
    w_ih, w_hh, b_ih, b_hh, w_lin, b_lin = params
    L, in_size = seq.shape
    assert in_size == 1, "kernel specializes the module's input_size=1"
    H = w_hh.shape[1]
    G = 4 * H                                  # 128 -> one lane-dense vreg row
    out_size = w_lin.shape[0]
    assert out_size == 1, "VPU-reduce epilogue specializes the module's out_size=1"

    # ---- prepack everything into ONE lane-dense f32 slab (single DMA) ------
    # sigmoid-from-tanh folding: scale the i/f/o gate lanes of W_ih, W_hh and
    # the combined bias by 0.5 (exact, power of two) so the kernel needs only
    # one tanh per step over the whole gate vector.
    half = jnp.concatenate([
        jnp.full((2 * H,), 0.5, jnp.float32),   # i, f
        jnp.ones((H,), jnp.float32),            # g
        jnp.full((H,), 0.5, jnp.float32),       # o
    ])
    whh_rows = w_hh.T * half                                    # (H, 4H)
    seq_rows = jnp.broadcast_to(seq.reshape(L, 1), (L, G))      # (L, 4H)
    wih_row  = (w_ih.T * half).reshape(1, G)                    # (1, 4H)
    bias_row = ((b_ih + b_hh) * half).reshape(1, G)             # (1, 4H)
    wlin_row = jnp.zeros((1, G), jnp.float32).at[:, :H].set(w_lin)
    blin_row = jnp.zeros((1, G), jnp.float32).at[:, :out_size].set(
        b_lin.reshape(1, out_size))

    # Slab row layout (both multi-row pieces start on a sublane-tile boundary).
    r_whh, r_seq = 0, H
    r_wih, r_bias, r_wlin, r_blin = H + L, H + L + 1, H + L + 2, H + L + 3
    n_rows = H + L + 4
    pad = (-n_rows) % 8
    slab = jnp.concatenate(
        [whh_rows, seq_rows, wih_row, bias_row, wlin_row, blin_row], axis=0)
    if pad:
        slab = jnp.pad(slab, ((0, pad), (0, 0)))                # (48, 128) for H=32, L=8

    kernel = _build_lstm_kernel(L, H, out_size,
                                r_whh, r_seq, r_wih, r_bias, r_wlin, r_blin)
    vmem = pl.BlockSpec(memory_space=pltpu.MemorySpace.VMEM)
    pred, state = pl.pallas_call(
        kernel,
        out_shape=(jax.ShapeDtypeStruct((1, out_size), jnp.float32),
                   jax.ShapeDtypeStruct((2, H), jnp.float32)),
        in_specs=[vmem],
        out_specs=(vmem, vmem),
    )(slab)
    return pred[0], (state[0], state[1])


def make_params(key, input_size, hidden_size, out_size):
    """Deterministic init mimicking PyTorch's U(-1/sqrt(H), 1/sqrt(H))."""
    k = 1.0 / jnp.sqrt(hidden_size)
    keys = jax.random.split(key, 6)
    w_ih = jax.random.uniform(keys[0], (4 * hidden_size, input_size), jnp.float32, -k, k)
    w_hh = jax.random.uniform(keys[1], (4 * hidden_size, hidden_size), jnp.float32, -k, k)
    b_ih = jax.random.uniform(keys[2], (4 * hidden_size,), jnp.float32, -k, k)
    b_hh = jax.random.uniform(keys[3], (4 * hidden_size,), jnp.float32, -k, k)
    w_lin = jax.random.uniform(keys[4], (out_size, hidden_size), jnp.float32, -k, k)
    b_lin = jax.random.uniform(keys[5], (out_size,), jnp.float32, -k, k)
    return (w_ih, w_hh, b_ih, b_hh, w_lin, b_lin)


def reference_forward(seq, params):
    """Pure-JAX reference of the same PyTorch semantics (zero initial state)."""
    w_ih, w_hh, b_ih, b_hh, w_lin, b_lin = params
    H = w_hh.shape[1]

    def step(carry, x_t):
        h, c = carry
        gates = x_t @ w_ih.T + h @ w_hh.T + b_ih + b_hh
        i = jax.nn.sigmoid(gates[0 * H:1 * H])
        f = jax.nn.sigmoid(gates[1 * H:2 * H])
        g = jnp.tanh(gates[2 * H:3 * H])
        o = jax.nn.sigmoid(gates[3 * H:4 * H])
        c = f * c + i * g
        h = o * jnp.tanh(c)
        return (h, c), h

    (h_last, c_last), _ = lax.scan(step, (jnp.zeros(H), jnp.zeros(H)), seq)
    pred = jnp.sum(h_last * w_lin, axis=-1) + b_lin   # exact f32 Linear (PyTorch-faithful)
    return pred, h_last, c_last


if __name__ == "__main__":
    INPUT_SIZE = 1
    HIDDEN_SIZE = 32     # 4H = 128 -> gate vector is exactly one lane-dense vreg
    OUT_SIZE = 1
    SEQ_LEN = 8

    key = jax.random.PRNGKey(0)
    k_param, k_data = jax.random.split(key)
    params = make_params(k_param, INPUT_SIZE, HIDDEN_SIZE, OUT_SIZE)
    seq = jax.random.normal(k_data, (SEQ_LEN, INPUT_SIZE), jnp.float32)

    # TODO(synk): the PyTorch module carries self.hidden across successive
    # forward() calls; this kernel implements the zero-initial-state call and
    # returns (h_T, c_T) so a caller can thread the state explicitly.
    pred, (h_T, c_T) = lstm_network_forward(seq, params)
    pred = jax.block_until_ready(pred)

    ref_pred, ref_h, ref_c = reference_forward(seq, params)
    assert pred.shape == (OUT_SIZE,)
    assert jnp.allclose(pred, ref_pred, atol=1e-5, rtol=1e-5), (pred, ref_pred)
    assert jnp.allclose(h_T, ref_h, atol=1e-5, rtol=1e-5)
    assert jnp.allclose(c_T, ref_c, atol=1e-5, rtol=1e-5)

    print("KERNEL_OK")
</pallas_src>

<mosaic_0001>
module attributes {stable_mosaic.version = 11 : i64} {
  func.func @lstm_kernel(%arg0: memref<48x128xf32, #tpu.memory_space<vmem>>, %arg1: memref<1x1xf32, #tpu.memory_space<vmem>>, %arg2: memref<2x32xf32, #tpu.memory_space<vmem>>) attributes {dimension_semantics = [], scalar_prefetch = 0 : i64, scratch_operands = 0 : i64, tpu.core_type = #tpu.core_type<tc>} {
    %c0 = arith.constant 0 : index
    %c0_0 = arith.constant 0 : index
    %0 = vector.load %arg0[%c0, %c0_0] : memref<48x128xf32, #tpu.memory_space<vmem>>, vector<32x128xf32>
    %c32 = arith.constant 32 : index
    %c0_1 = arith.constant 0 : index
    %1 = vector.load %arg0[%c32, %c0_1] : memref<48x128xf32, #tpu.memory_space<vmem>>, vector<8x128xf32>
    %c40 = arith.constant 40 : index
    %c0_2 = arith.constant 0 : index
    %2 = vector.load %arg0[%c40, %c0_2] : memref<48x128xf32, #tpu.memory_space<vmem>>, vector<1x128xf32>
    %c41 = arith.constant 41 : index
    %c0_3 = arith.constant 0 : index
    %3 = vector.load %arg0[%c41, %c0_3] : memref<48x128xf32, #tpu.memory_space<vmem>>, vector<1x128xf32>
    %4 = vector.broadcast %2 : vector<1x128xf32> to vector<8x128xf32>
    %5 = arith.mulf %1, %4 : vector<8x128xf32>
    %6 = vector.broadcast %3 : vector<1x128xf32> to vector<8x128xf32>
    %7 = arith.addf %5, %6 : vector<8x128xf32>
    %cst = arith.constant 0.000000e+00 : f32
    %8 = vector.broadcast %cst : f32 to vector<1x32xf32>
    %cst_4 = arith.constant 0.000000e+00 : f32
    %9 = vector.broadcast %cst_4 : f32 to vector<1x32xf32>
    %cst_5 = arith.constant dense<0.000000e+00> : vector<1x128xf32>
    %10 = tpu.matmul %8, %0, %cst_5 {dimension_numbers = #tpu.dot_dimension_numbers<[1], [0], [0], [1], [0, 0, 1, 1], [], []>} : vector<1x32xf32>, vector<32x128xf32>, vector<1x128xf32> -> vector<1x128xf32>
    %11 = vector.extract_strided_slice %7 {offsets = [0, 0], sizes = [1, 128], strides = [1, 1]} : vector<8x128xf32> to vector<1x128xf32>
    %12 = arith.addf %10, %11 : vector<1x128xf32>
    %13 = math.tanh %12 : vector<1x128xf32>
    %14 = vector.extract_strided_slice %13 {offsets = [0, 0], sizes = [1, 32], strides = [1, 1]} : vector<1x128xf32> to vector<1x32xf32>
    %cst_6 = arith.constant 5.000000e-01 : f32
    %15 = vector.broadcast %cst_6 : f32 to vector<1x32xf32>
    %16 = arith.mulf %15, %14 : vector<1x32xf32>
    %cst_7 = arith.constant 5.000000e-01 : f32
    %17 = vector.broadcast %cst_7 : f32 to vector<1x32xf32>
    %18 = arith.addf %16, %17 : vector<1x32xf32>
    %19 = vector.extract_strided_slice %13 {offsets = [0, 32], sizes = [1, 32], strides = [1, 1]} : vector<1x128xf32> to vector<1x32xf32>
    %cst_8 = arith.constant 5.000000e-01 : f32
    %20 = vector.broadcast %cst_8 : f32 to vector<1x32xf32>
    %21 = arith.mulf %20, %19 : vector<1x32xf32>
    %cst_9 = arith.constant 5.000000e-01 : f32
    %22 = vector.broadcast %cst_9 : f32 to vector<1x32xf32>
    %23 = arith.addf %21, %22 : vector<1x32xf32>
    %24 = vector.extract_strided_slice %13 {offsets = [0, 64], sizes = [1, 32], strides = [1, 1]} : vector<1x128xf32> to vector<1x32xf32>
    %25 = vector.extract_strided_slice %13 {offsets = [0, 96], sizes = [1, 32], strides = [1, 1]} : vector<1x128xf32> to vector<1x32xf32>
    %cst_10 = arith.constant 5.000000e-01 : f32
    %26 = vector.broadcast %cst_10 : f32 to vector<1x32xf32>
    %27 = arith.mulf %26, %25 : vector<1x32xf32>
    %cst_11 = arith.constant 5.000000e-01 : f32
    %28 = vector.broadcast %cst_11 : f32 to vector<1x32xf32>
    %29 = arith.addf %27, %28 : vector<1x32xf32>
    %30 = arith.mulf %23, %9 : vector<1x32xf32>
    %31 = arith.mulf %18, %24 : vector<1x32xf32>
    %32 = arith.addf %30, %31 : vector<1x32xf32>
    %33 = math.tanh %32 : vector<1x32xf32>
    %34 = arith.mulf %29, %33 : vector<1x32xf32>
    %cst_12 = arith.constant dense<0.000000e+00> : vector<1x128xf32>
    %35 = tpu.matmul %34, %0, %cst_12 {dimension_numbers = #tpu.dot_dimension_numbers<[1], [0], [0], [1], [0, 0, 1, 1], [], []>} : vector<1x32xf32>, vector<32x128xf32>, vector<1x128xf32> -> vector<1x128xf32>
    %36 = vector.extract_strided_slice %7 {offsets = [1, 0], sizes = [1, 128], strides = [1, 1]} : vector<8x128xf32> to vector<1x128xf32>
    %37 = arith.addf %35, %36 : vector<1x128xf32>
    %38 = math.tanh %37 : vector<1x128xf32>
    %39 = vector.extract_strided_slice %38 {offsets = [0, 0], sizes = [1, 32], strides = [1, 1]} : vector<1x128xf32> to vector<1x32xf32>
    %cst_13 = arith.constant 5.000000e-01 : f32
    %40 = vector.broadcast %cst_13 : f32 to vector<1x32xf32>
    %41 = arith.mulf %40, %39 : vector<1x32xf32>
    %cst_14 = arith.constant 5.000000e-01 : f32
    %42 = vector.broadcast %cst_14 : f32 to vector<1x32xf32>
    %43 = arith.addf %41, %42 : vector<1x32xf32>
    %44 = vector.extract_strided_slice %38 {offsets = [0, 32], sizes = [1, 32], strides = [1, 1]} : vector<1x128xf32> to vector<1x32xf32>
    %cst_15 = arith.constant 5.000000e-01 : f32
    %45 = vector.broadcast %cst_15 : f32 to vector<1x32xf32>
    %46 = arith.mulf %45, %44 : vector<1x32xf32>
    %cst_16 = arith.constant 5.000000e-01 : f32
    %47 = vector.broadcast %cst_16 : f32 to vector<1x32xf32>
    %48 = arith.addf %46, %47 : vector<1x32xf32>
    %49 = vector.extract_strided_slice %38 {offsets = [0, 64], sizes = [1, 32], strides = [1, 1]} : vector<1x128xf32> to vector<1x32xf32>
    %50 = vector.extract_strided_slice %38 {offsets = [0, 96], sizes = [1, 32], strides = [1, 1]} : vector<1x128xf32> to vector<1x32xf32>
    %cst_17 = arith.constant 5.000000e-01 : f32
    %51 = vector.broadcast %cst_17 : f32 to vector<1x32xf32>
    %52 = arith.mulf %51, %50 : vector<1x32xf32>
    %cst_18 = arith.constant 5.000000e-01 : f32
    %53 = vector.broadcast %cst_18 : f32 to vector<1x32xf32>
    %54 = arith.addf %52, %53 : vector<1x32xf32>
    %55 = arith.mulf %48, %32 : vector<1x32xf32>
    %56 = arith.mulf %43, %49 : vector<1x32xf32>
    %57 = arith.addf %55, %56 : vector<1x32xf32>
    %58 = math.tanh %57 : vector<1x32xf32>
    %59 = arith.mulf %54, %58 : vector<1x32xf32>
    %cst_19 = arith.constant dense<0.000000e+00> : vector<1x128xf32>
    %60 = tpu.matmul %59, %0, %cst_19 {dimension_numbers = #tpu.dot_dimension_numbers<[1], [0], [0], [1], [0, 0, 1, 1], [], []>} : vector<1x32xf32>, vector<32x128xf32>, vector<1x128xf32> -> vector<1x128xf32>
    %61 = vector.extract_strided_slice %7 {offsets = [2, 0], sizes = [1, 128], strides = [1, 1]} : vector<8x128xf32> to vector<1x128xf32>
    %62 = arith.addf %60, %61 : vector<1x128xf32>
    %63 = math.tanh %62 : vector<1x128xf32>
    %64 = vector.extract_strided_slice %63 {offsets = [0, 0], sizes = [1, 32], strides = [1, 1]} : vector<1x128xf32> to vector<1x32xf32>
    %cst_20 = arith.constant 5.000000e-01 : f32
    %65 = vector.broadcast %cst_20 : f32 to vector<1x32xf32>
    %66 = arith.mulf %65, %64 : vector<1x32xf32>
    %cst_21 = arith.constant 5.000000e-01 : f32
    %67 = vector.broadcast %cst_21 : f32 to vector<1x32xf32>
    %68 = arith.addf %66, %67 : vector<1x32xf32>
    %69 = vector.extract_strided_slice %63 {offsets = [0, 32], sizes = [1, 32], strides = [1, 1]} : vector<1x128xf32> to vector<1x32xf32>
    %cst_22 = arith.constant 5.000000e-01 : f32
    %70 = vector.broadcast %cst_22 : f32 to vector<1x32xf32>
    %71 = arith.mulf %70, %69 : vector<1x32xf32>
    %cst_23 = arith.constant 5.000000e-01 : f32
    %72 = vector.broadcast %cst_23 : f32 to vector<1x32xf32>
    %73 = arith.addf %71, %72 : vector<1x32xf32>
    %74 = vector.extract_strided_slice %63 {offsets = [0, 64], sizes = [1, 32], strides = [1, 1]} : vector<1x128xf32> to vector<1x32xf32>
    %75 = vector.extract_strided_slice %63 {offsets = [0, 96], sizes = [1, 32], strides = [1, 1]} : vector<1x128xf32> to vector<1x32xf32>
    %cst_24 = arith.constant 5.000000e-01 : f32
    %76 = vector.broadcast %cst_24 : f32 to vector<1x32xf32>
    %77 = arith.mulf %76, %75 : vector<1x32xf32>
    %cst_25 = arith.constant 5.000000e-01 : f32
    %78 = vector.broadcast %cst_25 : f32 to vector<1x32xf32>
    %79 = arith.addf %77, %78 : vector<1x32xf32>
    %80 = arith.mulf %73, %57 : vector<1x32xf32>
    %81 = arith.mulf %68, %74 : vector<1x32xf32>
    %82 = arith.addf %80, %81 : vector<1x32xf32>
    %83 = math.tanh %82 : vector<1x32xf32>
    %84 = arith.mulf %79, %83 : vector<1x32xf32>
    %cst_26 = arith.constant dense<0.000000e+00> : vector<1x128xf32>
    %85 = tpu.matmul %84, %0, %cst_26 {dimension_numbers = #tpu.dot_dimension_numbers<[1], [0], [0], [1], [0, 0, 1, 1], [], []>} : vector<1x32xf32>, vector<32x128xf32>, vector<1x128xf32> -> vector<1x128xf32>
    %86 = vector.extract_strided_slice %7 {offsets = [3, 0], sizes = [1, 128], strides = [1, 1]} : vector<8x128xf32> to vector<1x128xf32>
    %87 = arith.addf %85, %86 : vector<1x128xf32>
    %88 = math.tanh %87 : vector<1x128xf32>
    %89 = vector.extract_strided_slice %88 {offsets = [0, 0], sizes = [1, 32], strides = [1, 1]} : vector<1x128xf32> to vector<1x32xf32>
    %cst_27 = arith.constant 5.000000e-01 : f32
    %90 = vector.broadcast %cst_27 : f32 to vector<1x32xf32>
    %91 = arith.mulf %90, %89 : vector<1x32xf32>
    %cst_28 = arith.constant 5.000000e-01 : f32
    %92 = vector.broadcast %cst_28 : f32 to vector<1x32xf32>
    %93 = arith.addf %91, %92 : vector<1x32xf32>
    %94 = vector.extract_strided_slice %88 {offsets = [0, 32], sizes = [1, 32], strides = [1, 1]} : vector<1x128xf32> to vector<1x32xf32>
    %cst_29 = arith.constant 5.000000e-01 : f32
    %95 = vector.broadcast %cst_29 : f32 to vector<1x32xf32>
    %96 = arith.mulf %95, %94 : vector<1x32xf32>
    %cst_30 = arith.constant 5.000000e-01 : f32
    %97 = vector.broadcast %cst_30 : f32 to vector<1x32xf32>
    %98 = arith.addf %96, %97 : vector<1x32xf32>
    %99 = vector.extract_strided_slice %88 {offsets = [0, 64], sizes = [1, 32], strides = [1, 1]} : vector<1x128xf32> to vector<1x32xf32>
    %100 = vector.extract_strided_slice %88 {offsets = [0, 96], sizes = [1, 32], strides = [1, 1]} : vector<1x128xf32> to vector<1x32xf32>
    %cst_31 = arith.constant 5.000000e-01 : f32
    %101 = vector.broadcast %cst_31 : f32 to vector<1x32xf32>
    %102 = arith.mulf %101, %100 : vector<1x32xf32>
    %cst_32 = arith.constant 5.000000e-01 : f32
    %103 = vector.broadcast %cst_32 : f32 to vector<1x32xf32>
    %104 = arith.addf %102, %103 : vector<1x32xf32>
    %105 = arith.mulf %98, %82 : vector<1x32xf32>
    %106 = arith.mulf %93, %99 : vector<1x32xf32>
    %107 = arith.addf %105, %106 : vector<1x32xf32>
    %108 = math.tanh %107 : vector<1x32xf32>
    %109 = arith.mulf %104, %108 : vector<1x32xf32>
    %cst_33 = arith.constant dense<0.000000e+00> : vector<1x128xf32>
    %110 = tpu.matmul %109, %0, %cst_33 {dimension_numbers = #tpu.dot_dimension_numbers<[1], [0], [0], [1], [0, 0, 1, 1], [], []>} : vector<1x32xf32>, vector<32x128xf32>, vector<1x128xf32> -> vector<1x128xf32>
    %111 = vector.extract_strided_slice %7 {offsets = [4, 0], sizes = [1, 128], strides = [1, 1]} : vector<8x128xf32> to vector<1x128xf32>
    %112 = arith.addf %110, %111 : vector<1x128xf32>
    %113 = math.tanh %112 : vector<1x128xf32>
    %114 = vector.extract_strided_slice %113 {offsets = [0, 0], sizes = [1, 32], strides = [1, 1]} : vector<1x128xf32> to vector<1x32xf32>
    %cst_34 = arith.constant 5.000000e-01 : f32
    %115 = vector.broadcast %cst_34 : f32 to vector<1x32xf32>
    %116 = arith.mulf %115, %114 : vector<1x32xf32>
    %cst_35 = arith.constant 5.000000e-01 : f32
    %117 = vector.broadcast %cst_35 : f32 to vector<1x32xf32>
    %118 = arith.addf %116, %117 : vector<1x32xf32>
    %119 = vector.extract_strided_slice %113 {offsets = [0, 32], sizes = [1, 32], strides = [1, 1]} : vector<1x128xf32> to vector<1x32xf32>
    %cst_36 = arith.constant 5.000000e-01 : f32
    %120 = vector.broadcast %cst_36 : f32 to vector<1x32xf32>
    %121 = arith.mulf %120, %119 : vector<1x32xf32>
    %cst_37 = arith.constant 5.000000e-01 : f32
    %122 = vector.broadcast %cst_37 : f32 to vector<1x32xf32>
    %123 = arith.addf %121, %122 : vector<1x32xf32>
    %124 = vector.extract_strided_slice %113 {offsets = [0, 64], sizes = [1, 32], strides = [1, 1]} : vector<1x128xf32> to vector<1x32xf32>
    %125 = vector.extract_strided_slice %113 {offsets = [0, 96], sizes = [1, 32], strides = [1, 1]} : vector<1x128xf32> to vector<1x32xf32>
    %cst_38 = arith.constant 5.000000e-01 : f32
    %126 = vector.broadcast %cst_38 : f32 to vector<1x32xf32>
    %127 = arith.mulf %126, %125 : vector<1x32xf32>
    %cst_39 = arith.constant 5.000000e-01 : f32
    %128 = vector.broadcast %cst_39 : f32 to vector<1x32xf32>
    %129 = arith.addf %127, %128 : vector<1x32xf32>
    %130 = arith.mulf %123, %107 : vector<1x32xf32>
    %131 = arith.mulf %118, %124 : vector<1x32xf32>
    %132 = arith.addf %130, %131 : vector<1x32xf32>
    %133 = math.tanh %132 : vector<1x32xf32>
    %134 = arith.mulf %129, %133 : vector<1x32xf32>
    %cst_40 = arith.constant dense<0.000000e+00> : vector<1x128xf32>
    %135 = tpu.matmul %134, %0, %cst_40 {dimension_numbers = #tpu.dot_dimension_numbers<[1], [0], [0], [1], [0, 0, 1, 1], [], []>} : vector<1x32xf32>, vector<32x128xf32>, vector<1x128xf32> -> vector<1x128xf32>
    %136 = vector.extract_strided_slice %7 {offsets = [5, 0], sizes = [1, 128], strides = [1, 1]} : vector<8x128xf32> to vector<1x128xf32>
    %137 = arith.addf %135, %136 : vector<1x128xf32>
    %138 = math.tanh %137 : vector<1x128xf32>
    %139 = vector.extract_strided_slice %138 {offsets = [0, 0], sizes = [1, 32], strides = [1, 1]} : vector<1x128xf32> to vector<1x32xf32>
    %cst_41 = arith.constant 5.000000e-01 : f32
    %140 = vector.broadcast %cst_41 : f32 to vector<1x32xf32>
    %141 = arith.mulf %140, %139 : vector<1x32xf32>
    %cst_42 = arith.constant 5.000000e-01 : f32
    %142 = vector.broadcast %cst_42 : f32 to vector<1x32xf32>
    %143 = arith.addf %141, %142 : vector<1x32xf32>
    %144 = vector.extract_strided_slice %138 {offsets = [0, 32], sizes = [1, 32], strides = [1, 1]} : vector<1x128xf32> to vector<1x32xf32>
    %cst_43 = arith.constant 5.000000e-01 : f32
    %145 = vector.broadcast %cst_43 : f32 to vector<1x32xf32>
    %146 = arith.mulf %145, %144 : vector<1x32xf32>
    %cst_44 = arith.constant 5.000000e-01 : f32
    %147 = vector.broadcast %cst_44 : f32 to vector<1x32xf32>
    %148 = arith.addf %146, %147 : vector<1x32xf32>
    %149 = vector.extract_strided_slice %138 {offsets = [0, 64], sizes = [1, 32], strides = [1, 1]} : vector<1x128xf32> to vector<1x32xf32>
    %150 = vector.extract_strided_slice %138 {offsets = [0, 96], sizes = [1, 32], strides = [1, 1]} : vector<1x128xf32> to vector<1x32xf32>
    %cst_45 = arith.constant 5.000000e-01 : f32
    %151 = vector.broadcast %cst_45 : f32 to vector<1x32xf32>
    %152 = arith.mulf %151, %150 : vector<1x32xf32>
    %cst_46 = arith.constant 5.000000e-01 : f32
    %153 = vector.broadcast %cst_46 : f32 to vector<1x32xf32>
    %154 = arith.addf %152, %153 : vector<1x32xf32>
    %155 = arith.mulf %148, %132 : vector<1x32xf32>
    %156 = arith.mulf %143, %149 : vector<1x32xf32>
    %157 = arith.addf %155, %156 : vector<1x32xf32>
    %158 = math.tanh %157 : vector<1x32xf32>
    %159 = arith.mulf %154, %158 : vector<1x32xf32>
    %cst_47 = arith.constant dense<0.000000e+00> : vector<1x128xf32>
    %160 = tpu.matmul %159, %0, %cst_47 {dimension_numbers = #tpu.dot_dimension_numbers<[1], [0], [0], [1], [0, 0, 1, 1], [], []>} : vector<1x32xf32>, vector<32x128xf32>, vector<1x128xf32> -> vector<1x128xf32>
    %161 = vector.extract_strided_slice %7 {offsets = [6, 0], sizes = [1, 128], strides = [1, 1]} : vector<8x128xf32> to vector<1x128xf32>
    %162 = arith.addf %160, %161 : vector<1x128xf32>
    %163 = math.tanh %162 : vector<1x128xf32>
    %164 = vector.extract_strided_slice %163 {offsets = [0, 0], sizes = [1, 32], strides = [1, 1]} : vector<1x128xf32> to vector<1x32xf32>
    %cst_48 = arith.constant 5.000000e-01 : f32
    %165 = vector.broadcast %cst_48 : f32 to vector<1x32xf32>
    %166 = arith.mulf %165, %164 : vector<1x32xf32>
    %cst_49 = arith.constant 5.000000e-01 : f32
    %167 = vector.broadcast %cst_49 : f32 to vector<1x32xf32>
    %168 = arith.addf %166, %167 : vector<1x32xf32>
    %169 = vector.extract_strided_slice %163 {offsets = [0, 32], sizes = [1, 32], strides = [1, 1]} : vector<1x128xf32> to vector<1x32xf32>
    %cst_50 = arith.constant 5.000000e-01 : f32
    %170 = vector.broadcast %cst_50 : f32 to vector<1x32xf32>
    %171 = arith.mulf %170, %169 : vector<1x32xf32>
    %cst_51 = arith.constant 5.000000e-01 : f32
    %172 = vector.broadcast %cst_51 : f32 to vector<1x32xf32>
    %173 = arith.addf %171, %172 : vector<1x32xf32>
    %174 = vector.extract_strided_slice %163 {offsets = [0, 64], sizes = [1, 32], strides = [1, 1]} : vector<1x128xf32> to vector<1x32xf32>
    %175 = vector.extract_strided_slice %163 {offsets = [0, 96], sizes = [1, 32], strides = [1, 1]} : vector<1x128xf32> to vector<1x32xf32>
    %cst_52 = arith.constant 5.000000e-01 : f32
    %176 = vector.broadcast %cst_52 : f32 to vector<1x32xf32>
    %177 = arith.mulf %176, %175 : vector<1x32xf32>
    %cst_53 = arith.constant 5.000000e-01 : f32
    %178 = vector.broadcast %cst_53 : f32 to vector<1x32xf32>
    %179 = arith.addf %177, %178 : vector<1x32xf32>
    %180 = arith.mulf %173, %157 : vector<1x32xf32>
    %181 = arith.mulf %168, %174 : vector<1x32xf32>
    %182 = arith.addf %180, %181 : vector<1x32xf32>
    %183 = math.tanh %182 : vector<1x32xf32>
    %184 = arith.mulf %179, %183 : vector<1x32xf32>
    %cst_54 = arith.constant dense<0.000000e+00> : vector<1x128xf32>
    %185 = tpu.matmul %184, %0, %cst_54 {dimension_numbers = #tpu.dot_dimension_numbers<[1], [0], [0], [1], [0, 0, 1, 1], [], []>} : vector<1x32xf32>, vector<32x128xf32>, vector<1x128xf32> -> vector<1x128xf32>
    %186 = vector.extract_strided_slice %7 {offsets = [7, 0], sizes = [1, 128], strides = [1, 1]} : vector<8x128xf32> to vector<1x128xf32>
    %187 = arith.addf %185, %186 : vector<1x128xf32>
    %188 = math.tanh %187 : vector<1x128xf32>
    %189 = vector.extract_strided_slice %188 {offsets = [0, 0], sizes = [1, 32], strides = [1, 1]} : vector<1x128xf32> to vector<1x32xf32>
    %cst_55 = arith.constant 5.000000e-01 : f32
    %190 = vector.broadcast %cst_55 : f32 to vector<1x32xf32>
    %191 = arith.mulf %190, %189 : vector<1x32xf32>
    %cst_56 = arith.constant 5.000000e-01 : f32
    %192 = vector.broadcast %cst_56 : f32 to vector<1x32xf32>
    %193 = arith.addf %191, %192 : vector<1x32xf32>
    %194 = vector.extract_strided_slice %188 {offsets = [0, 32], sizes = [1, 32], strides = [1, 1]} : vector<1x128xf32> to vector<1x32xf32>
    %cst_57 = arith.constant 5.000000e-01 : f32
    %195 = vector.broadcast %cst_57 : f32 to vector<1x32xf32>
    %196 = arith.mulf %195, %194 : vector<1x32xf32>
    %cst_58 = arith.constant 5.000000e-01 : f32
    %197 = vector.broadcast %cst_58 : f32 to vector<1x32xf32>
    %198 = arith.addf %196, %197 : vector<1x32xf32>
    %199 = vector.extract_strided_slice %188 {offsets = [0, 64], sizes = [1, 32], strides = [1, 1]} : vector<1x128xf32> to vector<1x32xf32>
    %200 = vector.extract_strided_slice %188 {offsets = [0, 96], sizes = [1, 32], strides = [1, 1]} : vector<1x128xf32> to vector<1x32xf32>
    %cst_59 = arith.constant 5.000000e-01 : f32
    %201 = vector.broadcast %cst_59 : f32 to vector<1x32xf32>
    %202 = arith.mulf %201, %200 : vector<1x32xf32>
    %cst_60 = arith.constant 5.000000e-01 : f32
    %203 = vector.broadcast %cst_60 : f32 to vector<1x32xf32>
    %204 = arith.addf %202, %203 : vector<1x32xf32>
    %205 = arith.mulf %198, %182 : vector<1x32xf32>
    %206 = arith.mulf %193, %199 : vector<1x32xf32>
    %207 = arith.addf %205, %206 : vector<1x32xf32>
    %208 = math.tanh %207 : vector<1x32xf32>
    %209 = arith.mulf %204, %208 : vector<1x32xf32>
    %c42 = arith.constant 42 : index
    %c0_61 = arith.constant 0 : index
    %210 = vector.load %arg0[%c42, %c0_61] : memref<48x128xf32, #tpu.memory_space<vmem>>, vector<1x128xf32>
    %c43 = arith.constant 43 : index
    %c0_62 = arith.constant 0 : index
    %211 = vector.load %arg0[%c43, %c0_62] : memref<48x128xf32, #tpu.memory_space<vmem>>, vector<1x128xf32>
    %212 = vector.extract_strided_slice %210 {offsets = [0, 0], sizes = [1, 32], strides = [1, 1]} : vector<1x128xf32> to vector<1x32xf32>
    %213 = arith.mulf %209, %212 : vector<1x32xf32>
    %cst_63 = arith.constant dense<0.000000e+00> : vector<1xf32>
    %214 = vector.multi_reduction <add>, %213, %cst_63 [1] : vector<1x32xf32> to vector<1xf32>
    %215 = vector.shape_cast %214 : vector<1xf32> to vector<1x1xf32>
    %216 = vector.extract_strided_slice %211 {offsets = [0, 0], sizes = [1, 1], strides = [1, 1]} : vector<1x128xf32> to vector<1x1xf32>
    %217 = arith.addf %215, %216 : vector<1x1xf32>
    %c0_64 = arith.constant 0 : index
    %c0_65 = arith.constant 0 : index
    %218 = vector.load %arg1[%c0_64, %c0_65] : memref<1x1xf32, #tpu.memory_space<vmem>>, vector<1x1xf32>
    tpu.vector_store %arg1[%c0_64, %c0_65], %217 {strides = array<i32>} : memref<1x1xf32, #tpu.memory_space<vmem>>, vector<1x1xf32>,
    %c0_66 = arith.constant 0 : index
    %c0_67 = arith.constant 0 : index
    %219 = vector.load %arg2[%c0_66, %c0_67] : memref<2x32xf32, #tpu.memory_space<vmem>>, vector<1x32xf32>
    tpu.vector_store %arg2[%c0_66, %c0_67], %209 {strides = array<i32>} : memref<2x32xf32, #tpu.memory_space<vmem>>, vector<1x32xf32>,
    %c1 = arith.constant 1 : index
    %c0_68 = arith.constant 0 : index
    %220 = vector.load %arg2[%c1, %c0_68] : memref<2x32xf32, #tpu.memory_space<vmem>>, vector<1x32xf32>
    tpu.vector_store %arg2[%c1, %c0_68], %207 {strides = array<i32>} : memref<2x32xf32, #tpu.memory_space<vmem>>, vector<1x32xf32>,
    return
  }
}

</mosaic_0001>

<llo_original>
// kernel: tpu_custom_call.1
$region0: #{tpu_custom_call.1}
  #allocation0 [shape = 'u32[]', space=smem, size = 0x4, offset = 0x4, fixed_abs, tag = 'smem constant byte address 0x4 - core index']
  #allocation1 [shape = 'u32[144,128]{1,0:T(1,128)}', space=vmem, size = 0x12000, scoped, tag = 'internal scratch']
  %s0 = inlined_call_operand.hbm [shape: f32[48,128], index: 0, kind: input, shape index: {}]
  %s1 = inlined_call_operand.hbm [shape: f32[1,1], index: 1, kind: output, shape index: {0}]
  %s2 = inlined_call_operand.hbm [shape: f32[2,32], index: 2, kind: output, shape index: {1}]
  %3 = xla_tuple %s1, %s2
  %s4 = sld [smem:[#allocation0]]
  $region26: #{tpu_custom_call.1} parent=0
    _
  %s6 = ssub.s32 1, %s4
  %s7 = scalar_select 0, %s6, %s4
  $region1: #{tpu_custom_call.1} parent=0
    #allocation2 [shape = 'u8[24576]{0}', space=vmem, size = 0x6000, scoped, tag = 'input window, operand 0, single buffered']
    #allocation3 [shape = 's32[1]{0}', space=sflag, size = 0x4, scoped, tag = 'scoped memory for tpu_custom_call.1']
    #allocation4 [shape = 's32[1]{0}', space=sflag, size = 0x4, scoped, tag = 'scoped memory for tpu_custom_call.1']
    #allocation5 [shape = 'u8[512]{0}', space=vmem, size = 0x400, scoped, tag = 'output window, operand 0, single buffered']
    #allocation6 [shape = 'u8[1024]{0}', space=vmem, size = 0x400, scoped, tag = 'output window, operand 1, single buffered']
    #allocation7 [shape = 's32[1]{0}', space=sflag, size = 0x4, scoped, tag = 'scoped memory for tpu_custom_call.1']
    %8 = vsyncpa [#allocation3], 0
    %9 = vsyncpa [#allocation4], 0
    %10 = vsyncpa [#allocation7], 0
    // Predicated region
    $region2: #{tpu_custom_call.1} parent=1 // pred_check
      _
    $region3: #{tpu_custom_call.1} parent=1 // pred_check_branch
      %12 = sbr.rel (0) target = $region5
    $region4: #{tpu_custom_call.1} parent=1 // pred_region
      %s14 = ssub.s32 768, 768
      %15 = vsyncadd [#allocation3], %s14
      %s16 = sshll.u32 [#allocation2], 4
      %s17 = int_to_ptr.vmem [resolvable:$true] %s16
      %22 = dma.hbm_to_vmem [thread:$0]  %s0, 768, %s17, [#allocation3], 128, 128, 8
    $region5: #{tpu_custom_call.1} parent=1 // pred_fallthru
      _
    // Predicated region
    $region6: #{tpu_custom_call.1} parent=1 // pred_check
      _
    $region7: #{tpu_custom_call.1} parent=1 // pred_check_branch
      %24 = sbr.rel (0) target = $region9
    $region8: #{tpu_custom_call.1} parent=1 // pred_region
      %25 = dma.done [#allocation3], 768
    $region9: #{tpu_custom_call.1} parent=1 // pred_fallthru
      _
    %v26 = vld [vmem:[#allocation2] sm:$0xff]
    %v27 = vld [vmem:[#allocation2 + $0x8] sm:$0xff]
    %v28 = vld [vmem:[#allocation2 + $0x10] sm:$0xff]
    %v29 = vld [vmem:[#allocation2 + $0x18] sm:$0xff]
    %v30 = vld [vmem:[#allocation2 + $0x20] sm:$0xff]
    %v31 = vld [vmem:[#allocation2 + $0x28] sm:$0x1]
    %v32 = vld [vmem:[#allocation2 + $0x29] sm:$0x1]
    %v33 = vlaneseq
    %v34 = vshrl.u32 %v33, 7
    %v35 = vsub.s32 0, %v34
    %v36 = vrot.slane %v31, %v35
    %v37 = vmul.f32 %v30, %v36
    %v38 = vlaneseq
    %v39 = vshrl.u32 %v38, 7
    %v40 = vsub.s32 0, %v39
    %v41 = vrot.slane %v32, %v40
    %v42 = vadd.f32 %v37, %v41
    %vm43 = vcmask 261120
    %v45 = vsel %vm43, 0.0, 0
    %47 = vmatprep.subr.mxu0 0.0
    %48 = vmatpush1.msra.mxu0 %v26
    %49 = vmatprep.subr.mxu0 0.0
    %50 = vmatpush1.msra.mxu0 %v27
    %51 = vmatprep.subr.mxu0 0.0
    %52 = vmatpush1.msra.mxu0 %v28
    %53 = vmatprep.subr.mxu0 0.0
    %54 = vmatpush1.msra.mxu0 %v29
    %55 = vmatprep.subr.mxu0 0.0
    %56 = vmatpush1.msra.mxu0 0.0
    %57 = vmatprep.subr.mxu0 0.0
    %58 = vmatpush1.msra.mxu0 0.0
    %59 = vmatprep.subr.mxu0 0.0
    %60 = vmatpush1.msra.mxu0 0.0
    %61 = vmatprep.subr.mxu0 0.0
    %62 = vmatpush1.msra.mxu0 0.0
    %63 = vmatprep.subr.mxu0 0.0
    %64 = vmatpush1.msra.mxu0 0.0
    %65 = vmatprep.subr.mxu0 0.0
    %66 = vmatpush1.msra.mxu0 0.0
    %67 = vmatprep.subr.mxu0 0.0
    %68 = vmatpush1.msra.mxu0 0.0
    %69 = vmatprep.subr.mxu0 0.0
    %70 = vmatpush1.msra.mxu0 0.0
    %71 = vmatprep.subr.mxu0 0.0
    %72 = vmatpush1.msra.mxu0 0.0
    %73 = vmatprep.subr.mxu0 0.0
    %74 = vmatpush1.msra.mxu0 0.0
    %75 = vmatprep.subr.mxu0 0.0
    %76 = vmatpush1.msra.mxu0 0.0
    %77 = vmatprep.subr.mxu0 0.0
    %78 = vmatpush1.msra.mxu0 0.0
    %79 = vmatprep.subr.mxu0 0.0
    %80 = vmatpush1.msra.mxu0 0.0
    %81 = vmatprep.subr.mxu0 0.0
    %82 = vmatpush1.msra.mxu0 0.0
    %83 = vmatprep.subr.mxu0 0.0
    %84 = vmatpush1.msra.mxu0 0.0
    %85 = vmatprep.subr.mxu0 0.0
    %86 = vmatpush1.msra.mxu0 0.0
    %87 = vmatprep.subr.mxu0 0.0
    %88 = vmatpush1.msra.mxu0 0.0
    %89 = vmatprep.subr.mxu0 0.0
    %90 = vmatpush1.msra.mxu0 0.0
    %91 = vmatprep.subr.mxu0 0.0
    %92 = vmatpush1.msra.mxu0 0.0
    %93 = vmatprep.subr.mxu0 0.0
    %94 = vmatpush1.msra.mxu0 0.0
    %95 = vmatprep.subr.mxu0 0.0
    %96 = vmatpush1.msra.mxu0 0.0
    %97 = vmatprep.subr.mxu0 0.0
    %98 = vmatpush1.msra.mxu0 0.0
    %99 = vmatprep.subr.mxu0 0.0
    %100 = vmatpush1.msra.mxu0 0.0
    %101 = vmatprep.subr.mxu0 0.0
    %102 = vmatpush1.msra.mxu0 0.0
    %103 = vmatprep.subr.mxu0 0.0
    %104 = vmatpush1.msra.mxu0 0.0
    %105 = vmatprep.subr.mxu0 0.0
    %106 = vmatpush1.msra.mxu0 0.0
    %107 = vmatprep.subr.mxu0 0.0
    %108 = vmatpush1.msra.mxu0 0.0
    %109 = vmatprep.subr.mxu0 0.0
    %110 = vmatpush1.msra.mxu0 0.0
    %111 = vmatprep.mubr.f32.mxu0 0.0
    %112 = vmatmul.mubr.f32.gmra.mrb[0].mxu0 %v45
    %v113 = vpop.f32.mrb[0].mxu0
    %v114 = vadd.f32 %v42, %v113
    %v115 = vpop.f32.mrb[0].mxu0
    %116 = vdwg.mxu0
    %v117 = vtanh.pop %v114
    %v118 = vmul.f32 %v117, 0.5
    %v119 = vadd.f32 %v118, 0.5
    %v120 = vmul.f32 %v119, 0.0
    %122 = vrot.lane.b32.xlu0 %v117, 64
    %v123 = vpop.permute.xlu0 %122
    %v125 = vmul.f32 %v119, %v123
    %127 = vrot.lane.b32.xlu0 %v125, 32
    %v128 = vpop.permute.xlu0 %127
    %v130 = vadd.f32 %v120, %v128
    %v131 = vtanh.pop %v130
    %133 = vrot.lane.b32.xlu0 %v131, 64
    %v134 = vpop.permute.xlu0 %133
    %v136 = vmul.f32 %v119, %v134
    %138 = vrot.lane.b32.xlu0 %v136, 32
    %v139 = vpop.permute.xlu0 %138
    %v141 = vrot.slane %v42, 1
    %v143 = vsel %vm43, %v139, 0
    %145 = vmatprep.subr.mxu0 0.0
    %146 = vmatpush1.msra.mxu0 %v26
    %147 = vmatprep.subr.mxu0 0.0
    %148 = vmatpush1.msra.mxu0 %v27
    %149 = vmatprep.subr.mxu0 0.0
    %150 = vmatpush1.msra.mxu0 %v28
    %151 = vmatprep.subr.mxu0 0.0
    %152 = vmatpush1.msra.mxu0 %v29
    %153 = vmatprep.subr.mxu0 0.0
    %154 = vmatpush1.msra.mxu0 0.0
    %155 = vmatprep.subr.mxu0 0.0
    %156 = vmatpush1.msra.mxu0 0.0
    %157 = vmatprep.subr.mxu0 0.0
    %158 = vmatpush1.msra.mxu0 0.0
    %159 = vmatprep.subr.mxu0 0.0
    %160 = vmatpush1.msra.mxu0 0.0
    %161 = vmatprep.subr.mxu0 0.0
    %162 = vmatpush1.msra.mxu0 0.0
    %163 = vmatprep.subr.mxu0 0.0
    %164 = vmatpush1.msra.mxu0 0.0
    %165 = vmatprep.subr.mxu0 0.0
    %166 = vmatpush1.msra.mxu0 0.0
    %167 = vmatprep.subr.mxu0 0.0
    %168 = vmatpush1.msra.mxu0 0.0
    %169 = vmatprep.subr.mxu0 0.0
    %170 = vmatpush1.msra.mxu0 0.0
    %171 = vmatprep.subr.mxu0 0.0
    %172 = vmatpush1.msra.mxu0 0.0
    %173 = vmatprep.subr.mxu0 0.0
    %174 = vmatpush1.msra.mxu0 0.0
    %175 = vmatprep.subr.mxu0 0.0
    %176 = vmatpush1.msra.mxu0 0.0
    %177 = vmatprep.subr.mxu0 0.0
    %178 = vmatpush1.msra.mxu0 0.0
    %179 = vmatprep.subr.mxu0 0.0
    %180 = vmatpush1.msra.mxu0 0.0
    %181 = vmatprep.subr.mxu0 0.0
    %182 = vmatpush1.msra.mxu0 0.0
    %183 = vmatprep.subr.mxu0 0.0
    %184 = vmatpush1.msra.mxu0 0.0
    %185 = vmatprep.subr.mxu0 0.0
    %186 = vmatpush1.msra.mxu0 0.0
    %187 = vmatprep.subr.mxu0 0.0
    %188 = vmatpush1.msra.mxu0 0.0
    %189 = vmatprep.subr.mxu0 0.0
    %190 = vmatpush1.msra.mxu0 0.0
    %191 = vmatprep.subr.mxu0 0.0
    %192 = vmatpush1.msra.mxu0 0.0
    %193 = vmatprep.subr.mxu0 0.0
    %194 = vmatpush1.msra.mxu0 0.0
    %195 = vmatprep.subr.mxu0 0.0
    %196 = vmatpush1.msra.mxu0 0.0
    %197 = vmatprep.subr.mxu0 0.0
    %198 = vmatpush1.msra.mxu0 0.0
    %199 = vmatprep.subr.mxu0 0.0
    %200 = vmatpush1.msra.mxu0 0.0
    %201 = vmatprep.subr.mxu0 0.0
    %202 = vmatpush1.msra.mxu0 0.0
    %203 = vmatprep.subr.mxu0 0.0
    %204 = vmatpush1.msra.mxu0 0.0
    %205 = vmatprep.subr.mxu0 0.0
    %206 = vmatpush1.msra.mxu0 0.0
    %207 = vmatprep.subr.mxu0 0.0
    %208 = vmatpush1.msra.mxu0 0.0
    %209 = vmatprep.mubr.f32.mxu0 0.0
    %210 = vmatmul.mubr.f32.gmra.mrb[0].mxu0 %v143
    %v211 = vpop.f32.mrb[0].mxu0
    %v212 = vadd.f32 %v141, %v211
    %v213 = vpop.f32.mrb[0].mxu0
    %214 = vdwg.mxu0
    %v215 = vtanh.pop %v212
    %v216 = vmul.f32 %v215, 0.5
    %v217 = vadd.f32 %v216, 0.5
    %v218 = vmul.f32 %v217, %v130
    %220 = vrot.lane.b32.xlu0 %v215, 64
    %v221 = vpop.permute.xlu0 %220
    %v223 = vmul.f32 %v217, %v221
    %225 = vrot.lane.b32.xlu0 %v223, 32
    %v226 = vpop.permute.xlu0 %225
    %v228 = vadd.f32 %v218, %v226
    %v229 = vtanh.pop %v228
    %231 = vrot.lane.b32.xlu0 %v229, 64
    %v232 = vpop.permute.xlu0 %231
    %v234 = vmul.f32 %v217, %v232
    %236 = vrot.lane.b32.xlu0 %v234, 32
    %v237 = vpop.permute.xlu0 %236
    %v238 = vrot.slane %v42, 2
    %v240 = vsel %vm43, %v237, 0
    %242 = vmatprep.subr.mxu0 0.0
    %243 = vmatpush1.msra.mxu0 %v26
    %244 = vmatprep.subr.mxu0 0.0
    %245 = vmatpush1.msra.mxu0 %v27
    %246 = vmatprep.subr.mxu0 0.0
    %247 = vmatpush1.msra.mxu0 %v28
    %248 = vmatprep.subr.mxu0 0.0
    %249 = vmatpush1.msra.mxu0 %v29
    %250 = vmatprep.subr.mxu0 0.0
    %251 = vmatpush1.msra.mxu0 0.0
    %252 = vmatprep.subr.mxu0 0.0
    %253 = vmatpush1.msra.mxu0 0.0
    %254 = vmatprep.subr.mxu0 0.0
    %255 = vmatpush1.msra.mxu0 0.0
    %256 = vmatprep.subr.mxu0 0.0
    %257 = vmatpush1.msra.mxu0 0.0
    %258 = vmatprep.subr.mxu0 0.0
    %259 = vmatpush1.msra.mxu0 0.0
    %260 = vmatprep.subr.mxu0 0.0
    %261 = vmatpush1.msra.mxu0 0.0
    %262 = vmatprep.subr.mxu0 0.0
    %263 = vmatpush1.msra.mxu0 0.0
    %264 = vmatprep.subr.mxu0 0.0
    %265 = vmatpush1.msra.mxu0 0.0
    %266 = vmatprep.subr.mxu0 0.0
    %267 = vmatpush1.msra.mxu0 0.0
    %268 = vmatprep.subr.mxu0 0.0
    %269 = vmatpush1.msra.mxu0 0.0
    %270 = vmatprep.subr.mxu0 0.0
    %271 = vmatpush1.msra.mxu0 0.0
    %272 = vmatprep.subr.mxu0 0.0
    %273 = vmatpush1.msra.mxu0 0.0
    %274 = vmatprep.subr.mxu0 0.0
    %275 = vmatpush1.msra.mxu0 0.0
    %276 = vmatprep.subr.mxu0 0.0
    %277 = vmatpush1.msra.mxu0 0.0
    %278 = vmatprep.subr.mxu0 0.0
    %279 = vmatpush1.msra.mxu0 0.0
    %280 = vmatprep.subr.mxu0 0.0
    %281 = vmatpush1.msra.mxu0 0.0
    %282 = vmatprep.subr.mxu0 0.0
    %283 = vmatpush1.msra.mxu0 0.0
    %284 = vmatprep.subr.mxu0 0.0
    %285 = vmatpush1.msra.mxu0 0.0
    %286 = vmatprep.subr.mxu0 0.0
    %287 = vmatpush1.msra.mxu0 0.0
    %288 = vmatprep.subr.mxu0 0.0
    %289 = vmatpush1.msra.mxu0 0.0
    %290 = vmatprep.subr.mxu0 0.0
    %291 = vmatpush1.msra.mxu0 0.0
    %292 = vmatprep.subr.mxu0 0.0
    %293 = vmatpush1.msra.mxu0 0.0
    %294 = vmatprep.subr.mxu0 0.0
    %295 = vmatpush1.msra.mxu0 0.0
    %296 = vmatprep.subr.mxu0 0.0
    %297 = vmatpush1.msra.mxu0 0.0
    %298 = vmatprep.subr.mxu0 0.0
    %299 = vmatpush1.msra.mxu0 0.0
    %300 = vmatprep.subr.mxu0 0.0
    %301 = vmatpush1.msra.mxu0 0.0
    %302 = vmatprep.subr.mxu0 0.0
    %303 = vmatpush1.msra.mxu0 0.0
    %304 = vmatprep.subr.mxu0 0.0
    %305 = vmatpush1.msra.mxu0 0.0
    %306 = vmatprep.mubr.f32.mxu0 0.0
    %307 = vmatmul.mubr.f32.gmra.mrb[0].mxu0 %v240
    %v308 = vpop.f32.mrb[0].mxu0
    %v309 = vadd.f32 %v238, %v308
    %v310 = vpop.f32.mrb[0].mxu0
    %311 = vdwg.mxu0
    %v312 = vtanh.pop %v309
    %v313 = vmul.f32 %v312, 0.5
    %v314 = vadd.f32 %v313, 0.5
    %v315 = vmul.f32 %v314, %v228
    %317 = vrot.lane.b32.xlu0 %v312, 64
    %v318 = vpop.permute.xlu0 %317
    %v320 = vmul.f32 %v314, %v318
    %322 = vrot.lane.b32.xlu0 %v320, 32
    %v323 = vpop.permute.xlu0 %322
    %v325 = vadd.f32 %v315, %v323
    %v326 = vtanh.pop %v325
    %328 = vrot.lane.b32.xlu0 %v326, 64
    %v329 = vpop.permute.xlu0 %328
    %v331 = vmul.f32 %v314, %v329
    %333 = vrot.lane.b32.xlu0 %v331, 32
    %v334 = vpop.permute.xlu0 %333
    %v335 = vrot.slane %v42, 3
    %v337 = vsel %vm43, %v334, 0
    %339 = vmatprep.subr.mxu0 0.0
    %340 = vmatpush1.msra.mxu0 %v26
    %341 = vmatprep.subr.mxu0 0.0
    %342 = vmatpush1.msra.mxu0 %v27
    %343 = vmatprep.subr.mxu0 0.0
    %344 = vmatpush1.msra.mxu0 %v28
    %345 = vmatprep.subr.mxu0 0.0
    %346 = vmatpush1.msra.mxu0 %v29
    %347 = vmatprep.subr.mxu0 0.0
    %348 = vmatpush1.msra.mxu0 0.0
    %349 = vmatprep.subr.mxu0 0.0
    %350 = vmatpush1.msra.mxu0 0.0
    %351 = vmatprep.subr.mxu0 0.0
    %352 = vmatpush1.msra.mxu0 0.0
    %353 = vmatprep.subr.mxu0 0.0
    %354 = vmatpush1.msra.mxu0 0.0
    %355 = vmatprep.subr.mxu0 0.0
    %356 = vmatpush1.msra.mxu0 0.0
    %357 = vmatprep.subr.mxu0 0.0
    %358 = vmatpush1.msra.mxu0 0.0
    %359 = vmatprep.subr.mxu0 0.0
    %360 = vmatpush1.msra.mxu0 0.0
    %361 = vmatprep.subr.mxu0 0.0
    %362 = vmatpush1.msra.mxu0 0.0
    %363 = vmatprep.subr.mxu0 0.0
    %364 = vmatpush1.msra.mxu0 0.0
    %365 = vmatprep.subr.mxu0 0.0
    %366 = vmatpush1.msra.mxu0 0.0
    %367 = vmatprep.subr.mxu0 0.0
    %368 = vmatpush1.msra.mxu0 0.0
    %369 = vmatprep.subr.mxu0 0.0
    %370 = vmatpush1.msra.mxu0 0.0
    %371 = vmatprep.subr.mxu0 0.0
    %372 = vmatpush1.msra.mxu0 0.0
    %373 = vmatprep.subr.mxu0 0.0
    %374 = vmatpush1.msra.mxu0 0.0
    %375 = vmatprep.subr.mxu0 0.0
    %376 = vmatpush1.msra.mxu0 0.0
    %377 = vmatprep.subr.mxu0 0.0
    %378 = vmatpush1.msra.mxu0 0.0
    %379 = vmatprep.subr.mxu0 0.0
    %380 = vmatpush1.msra.mxu0 0.0
    %381 = vmatprep.subr.mxu0 0.0
    %382 = vmatpush1.msra.mxu0 0.0
    %383 = vmatprep.subr.mxu0 0.0
    %384 = vmatpush1.msra.mxu0 0.0
    %385 = vmatprep.subr.mxu0 0.0
    %386 = vmatpush1.msra.mxu0 0.0
    %387 = vmatprep.subr.mxu0 0.0
    %388 = vmatpush1.msra.mxu0 0.0
    %389 = vmatprep.subr.mxu0 0.0
    %390 = vmatpush1.msra.mxu0 0.0
    %391 = vmatprep.subr.mxu0 0.0
    %392 = vmatpush1.msra.mxu0 0.0
    %393 = vmatprep.subr.mxu0 0.0
    %394 = vmatpush1.msra.mxu0 0.0
    %395 = vmatprep.subr.mxu0 0.0
    %396 = vmatpush1.msra.mxu0 0.0
    %397 = vmatprep.subr.mxu0 0.0
    %398 = vmatpush1.msra.mxu0 0.0
    %399 = vmatprep.subr.mxu0 0.0
    %400 = vmatpush1.msra.mxu0 0.0
    %401 = vmatprep.subr.mxu0 0.0
    %402 = vmatpush1.msra.mxu0 0.0
    %403 = vmatprep.mubr.f32.mxu0 0.0
    %404 = vmatmul.mubr.f32.gmra.mrb[0].mxu0 %v337
    %v405 = vpop.f32.mrb[0].mxu0
    %v406 = vadd.f32 %v335, %v405
    %v407 = vpop.f32.mrb[0].mxu0
    %408 = vdwg.mxu0
    %v409 = vtanh.pop %v406
    %v410 = vmul.f32 %v409, 0.5
    %v411 = vadd.f32 %v410, 0.5
    %v412 = vmul.f32 %v411, %v325
    %414 = vrot.lane.b32.xlu0 %v409, 64
    %v415 = vpop.permute.xlu0 %414
    %v417 = vmul.f32 %v411, %v415
    %419 = vrot.lane.b32.xlu0 %v417, 32
    %v420 = vpop.permute.xlu0 %419
    %v422 = vadd.f32 %v412, %v420
    %v423 = vtanh.pop %v422
    %425 = vrot.lane.b32.xlu0 %v423, 64
    %v426 = vpop.permute.xlu0 %425
    %v428 = vmul.f32 %v411, %v426
    %430 = vrot.lane.b32.xlu0 %v428, 32
    %v431 = vpop.permute.xlu0 %430
    %v432 = vrot.slane %v42, 4
    %v434 = vsel %vm43, %v431, 0
    %436 = vmatprep.subr.mxu0 0.0
    %437 = vmatpush1.msra.mxu0 %v26
    %438 = vmatprep.subr.mxu0 0.0
    %439 = vmatpush1.msra.mxu0 %v27
    %440 = vmatprep.subr.mxu0 0.0
    %441 = vmatpush1.msra.mxu0 %v28
    %442 = vmatprep.subr.mxu0 0.0
    %443 = vmatpush1.msra.mxu0 %v29
    %444 = vmatprep.subr.mxu0 0.0
    %445 = vmatpush1.msra.mxu0 0.0
    %446 = vmatprep.subr.mxu0 0.0
    %447 = vmatpush1.msra.mxu0 0.0
    %448 = vmatprep.subr.mxu0 0.0
    %449 = vmatpush1.msra.mxu0 0.0
    %450 = vmatprep.subr.mxu0 0.0
    %451 = vmatpush1.msra.mxu0 0.0
    %452 = vmatprep.subr.mxu0 0.0
    %453 = vmatpush1.msra.mxu0 0.0
    %454 = vmatprep.subr.mxu0 0.0
    %455 = vmatpush1.msra.mxu0 0.0
    %456 = vmatprep.subr.mxu0 0.0
    %457 = vmatpush1.msra.mxu0 0.0
    %458 = vmatprep.subr.mxu0 0.0
    %459 = vmatpush1.msra.mxu0 0.0
    %460 = vmatprep.subr.mxu0 0.0
    %461 = vmatpush1.msra.mxu0 0.0
    %462 = vmatprep.subr.mxu0 0.0
    %463 = vmatpush1.msra.mxu0 0.0
    %464 = vmatprep.subr.mxu0 0.0
    %465 = vmatpush1.msra.mxu0 0.0
    %466 = vmatprep.subr.mxu0 0.0
    %467 = vmatpush1.msra.mxu0 0.0
    %468 = vmatprep.subr.mxu0 0.0
    %469 = vmatpush1.msra.mxu0 0.0
    %470 = vmatprep.subr.mxu0 0.0
    %471 = vmatpush1.msra.mxu0 0.0
    %472 = vmatprep.subr.mxu0 0.0
    %473 = vmatpush1.msra.mxu0 0.0
    %474 = vmatprep.subr.mxu0 0.0
    %475 = vmatpush1.msra.mxu0 0.0
    %476 = vmatprep.subr.mxu0 0.0
    %477 = vmatpush1.msra.mxu0 0.0
    %478 = vmatprep.subr.mxu0 0.0
    %479 = vmatpush1.msra.mxu0 0.0
    %480 = vmatprep.subr.mxu0 0.0
    %481 = vmatpush1.msra.mxu0 0.0
    %482 = vmatprep.subr.mxu0 0.0
    %483 = vmatpush1.msra.mxu0 0.0
    %484 = vmatprep.subr.mxu0 0.0
    %485 = vmatpush1.msra.mxu0 0.0
    %486 = vmatprep.subr.mxu0 0.0
    %487 = vmatpush1.msra.mxu0 0.0
    %488 = vmatprep.subr.mxu0 0.0
    %489 = vmatpush1.msra.mxu0 0.0
    %490 = vmatprep.subr.mxu0 0.0
    %491 = vmatpush1.msra.mxu0 0.0
    %492 = vmatprep.subr.mxu0 0.0
    %493 = vmatpush1.msra.mxu0 0.0
    %494 = vmatprep.subr.mxu0 0.0
    %495 = vmatpush1.msra.mxu0 0.0
    %496 = vmatprep.subr.mxu0 0.0
    %497 = vmatpush1.msra.mxu0 0.0
    %498 = vmatprep.subr.mxu0 0.0
    %499 = vmatpush1.msra.mxu0 0.0
    %500 = vmatprep.mubr.f32.mxu0 0.0
    %501 = vmatmul.mubr.f32.gmra.mrb[0].mxu0 %v434
    %v502 = vpop.f32.mrb[0].mxu0
    %v503 = vadd.f32 %v432, %v502
    %v504 = vpop.f32.mrb[0].mxu0
    %505 = vdwg.mxu0
    %v506 = vtanh.pop %v503
    %v507 = vmul.f32 %v506, 0.5
    %v508 = vadd.f32 %v507, 0.5
    %v509 = vmul.f32 %v508, %v422
    %511 = vrot.lane.b32.xlu0 %v506, 64
    %v512 = vpop.permute.xlu0 %511
    %v514 = vmul.f32 %v508, %v512
    %516 = vrot.lane.b32.xlu0 %v514, 32
    %v517 = vpop.permute.xlu0 %516
    %v519 = vadd.f32 %v509, %v517
    %v520 = vtanh.pop %v519
    %522 = vrot.lane.b32.xlu0 %v520, 64
    %v523 = vpop.permute.xlu0 %522
    %v525 = vmul.f32 %v508, %v523
    %527 = vrot.lane.b32.xlu0 %v525, 32
    %v528 = vpop.permute.xlu0 %527
    %v529 = vrot.slane %v42, 5
    %v531 = vsel %vm43, %v528, 0
    %533 = vmatprep.subr.mxu0 0.0
    %534 = vmatpush1.msra.mxu0 %v26
    %535 = vmatprep.subr.mxu0 0.0
    %536 = vmatpush1.msra.mxu0 %v27
    %537 = vmatprep.subr.mxu0 0.0
    %538 = vmatpush1.msra.mxu0 %v28
    %539 = vmatprep.subr.mxu0 0.0
    %540 = vmatpush1.msra.mxu0 %v29
    %541 = vmatprep.subr.mxu0 0.0
    %542 = vmatpush1.msra.mxu0 0.0
    %543 = vmatprep.subr.mxu0 0.0
    %544 = vmatpush1.msra.mxu0 0.0
    %545 = vmatprep.subr.mxu0 0.0
    %546 = vmatpush1.msra.mxu0 0.0
    %547 = vmatprep.subr.mxu0 0.0
    %548 = vmatpush1.msra.mxu0 0.0
    %549 = vmatprep.subr.mxu0 0.0
    %550 = vmatpush1.msra.mxu0 0.0
    %551 = vmatprep.subr.mxu0 0.0
    %552 = vmatpush1.msra.mxu0 0.0
    %553 = vmatprep.subr.mxu0 0.0
    %554 = vmatpush1.msra.mxu0 0.0
    %555 = vmatprep.subr.mxu0 0.0
    %556 = vmatpush1.msra.mxu0 0.0
    %557 = vmatprep.subr.mxu0 0.0
    %558 = vmatpush1.msra.mxu0 0.0
    %559 = vmatprep.subr.mxu0 0.0
    %560 = vmatpush1.msra.mxu0 0.0
    %561 = vmatprep.subr.mxu0 0.0
    %562 = vmatpush1.msra.mxu0 0.0
    %563 = vmatprep.subr.mxu0 0.0
    %564 = vmatpush1.msra.mxu0 0.0
    %565 = vmatprep.subr.mxu0 0.0
    %566 = vmatpush1.msra.mxu0 0.0
    %567 = vmatprep.subr.mxu0 0.0
    %568 = vmatpush1.msra.mxu0 0.0
    %569 = vmatprep.subr.mxu0 0.0
    %570 = vmatpush1.msra.mxu0 0.0
    %571 = vmatprep.subr.mxu0 0.0
    %572 = vmatpush1.msra.mxu0 0.0
    %573 = vmatprep.subr.mxu0 0.0
    %574 = vmatpush1.msra.mxu0 0.0
    %575 = vmatprep.subr.mxu0 0.0
    %576 = vmatpush1.msra.mxu0 0.0
    %577 = vmatprep.subr.mxu0 0.0
    %578 = vmatpush1.msra.mxu0 0.0
    %579 = vmatprep.subr.mxu0 0.0
    %580 = vmatpush1.msra.mxu0 0.0
    %581 = vmatprep.subr.mxu0 0.0
    %582 = vmatpush1.msra.mxu0 0.0
    %583 = vmatprep.subr.mxu0 0.0
    %584 = vmatpush1.msra.mxu0 0.0
    %585 = vmatprep.subr.mxu0 0.0
    %586 = vmatpush1.msra.mxu0 0.0
    %587 = vmatprep.subr.mxu0 0.0
    %588 = vmatpush1.msra.mxu0 0.0
    %589 = vmatprep.subr.mxu0 0.0
    %590 = vmatpush1.msra.mxu0 0.0
    %591 = vmatprep.subr.mxu0 0.0
    %592 = vmatpush1.msra.mxu0 0.0
    %593 = vmatprep.subr.mxu0 0.0
    %594 = vmatpush1.msra.mxu0 0.0
    %595 = vmatprep.subr.mxu0 0.0
    %596 = vmatpush1.msra.mxu0 0.0
    %597 = vmatprep.mubr.f32.mxu0 0.0
    %598 = vmatmul.mubr.f32.gmra.mrb[0].mxu0 %v531
    %v599 = vpop.f32.mrb[0].mxu0
    %v600 = vadd.f32 %v529, %v599
    %v601 = vpop.f32.mrb[0].mxu0
    %602 = vdwg.mxu0
    %v603 = vtanh.pop %v600
    %v604 = vmul.f32 %v603, 0.5
    %v605 = vadd.f32 %v604, 0.5
    %v606 = vmul.f32 %v605, %v519
    %608 = vrot.lane.b32.xlu0 %v603, 64
    %v609 = vpop.permute.xlu0 %608
    %v611 = vmul.f32 %v605, %v609
    %613 = vrot.lane.b32.xlu0 %v611, 32
    %v614 = vpop.permute.xlu0 %613
    %v616 = vadd.f32 %v606, %v614
    %v617 = vtanh.pop %v616
    %619 = vrot.lane.b32.xlu0 %v617, 64
    %v620 = vpop.permute.xlu0 %619
    %v622 = vmul.f32 %v605, %v620
    %624 = vrot.lane.b32.xlu0 %v622, 32
    %v625 = vpop.permute.xlu0 %624
    %v626 = vrot.slane %v42, 6
    %v628 = vsel %vm43, %v625, 0
    %630 = vmatprep.subr.mxu0 0.0
    %631 = vmatpush1.msra.mxu0 %v26
    %632 = vmatprep.subr.mxu0 0.0
    %633 = vmatpush1.msra.mxu0 %v27
    %634 = vmatprep.subr.mxu0 0.0
    %635 = vmatpush1.msra.mxu0 %v28
    %636 = vmatprep.subr.mxu0 0.0
    %637 = vmatpush1.msra.mxu0 %v29
    %638 = vmatprep.subr.mxu0 0.0
    %639 = vmatpush1.msra.mxu0 0.0
    %640 = vmatprep.subr.mxu0 0.0
    %641 = vmatpush1.msra.mxu0 0.0
    %642 = vmatprep.subr.mxu0 0.0
    %643 = vmatpush1.msra.mxu0 0.0
    %644 = vmatprep.subr.mxu0 0.0
    %645 = vmatpush1.msra.mxu0 0.0
    %646 = vmatprep.subr.mxu0 0.0
    %647 = vmatpush1.msra.mxu0 0.0
    %648 = vmatprep.subr.mxu0 0.0
    %649 = vmatpush1.msra.mxu0 0.0
    %650 = vmatprep.subr.mxu0 0.0
    %651 = vmatpush1.msra.mxu0 0.0
    %652 = vmatprep.subr.mxu0 0.0
    %653 = vmatpush1.msra.mxu0 0.0
    %654 = vmatprep.subr.mxu0 0.0
    %655 = vmatpush1.msra.mxu0 0.0
    %656 = vmatprep.subr.mxu0 0.0
    %657 = vmatpush1.msra.mxu0 0.0
    %658 = vmatprep.subr.mxu0 0.0
    %659 = vmatpush1.msra.mxu0 0.0
    %660 = vmatprep.subr.mxu0 0.0
    %661 = vmatpush1.msra.mxu0 0.0
    %662 = vmatprep.subr.mxu0 0.0
    %663 = vmatpush1.msra.mxu0 0.0
    %664 = vmatprep.subr.mxu0 0.0
    %665 = vmatpush1.msra.mxu0 0.0
    %666 = vmatprep.subr.mxu0 0.0
    %667 = vmatpush1.msra.mxu0 0.0
    %668 = vmatprep.subr.mxu0 0.0
    %669 = vmatpush1.msra.mxu0 0.0
    %670 = vmatprep.subr.mxu0 0.0
    %671 = vmatpush1.msra.mxu0 0.0
    %672 = vmatprep.subr.mxu0 0.0
    %673 = vmatpush1.msra.mxu0 0.0
    %674 = vmatprep.subr.mxu0 0.0
    %675 = vmatpush1.msra.mxu0 0.0
    %676 = vmatprep.subr.mxu0 0.0
    %677 = vmatpush1.msra.mxu0 0.0
    %678 = vmatprep.subr.mxu0 0.0
    %679 = vmatpush1.msra.mxu0 0.0
    %680 = vmatprep.subr.mxu0 0.0
    %681 = vmatpush1.msra.mxu0 0.0
    %682 = vmatprep.subr.mxu0 0.0
    %683 = vmatpush1.msra.mxu0 0.0
    %684 = vmatprep.subr.mxu0 0.0
    %685 = vmatpush1.msra.mxu0 0.0
    %686 = vmatprep.subr.mxu0 0.0
    %687 = vmatpush1.msra.mxu0 0.0
    %688 = vmatprep.subr.mxu0 0.0
    %689 = vmatpush1.msra.mxu0 0.0
    %690 = vmatprep.subr.mxu0 0.0
    %691 = vmatpush1.msra.mxu0 0.0
    %692 = vmatprep.subr.mxu0 0.0
    %693 = vmatpush1.msra.mxu0 0.0
    %694 = vmatprep.mubr.f32.mxu0 0.0
    %695 = vmatmul.mubr.f32.gmra.mrb[0].mxu0 %v628
    %v696 = vpop.f32.mrb[0].mxu0
    %v697 = vadd.f32 %v626, %v696
    %v698 = vpop.f32.mrb[0].mxu0
    %699 = vdwg.mxu0
    %v700 = vtanh.pop %v697
    %v701 = vmul.f32 %v700, 0.5
    %v702 = vadd.f32 %v701, 0.5
    %v703 = vmul.f32 %v702, %v616
    %705 = vrot.lane.b32.xlu0 %v700, 64
    %v706 = vpop.permute.xlu0 %705
    %v708 = vmul.f32 %v702, %v706
    %710 = vrot.lane.b32.xlu0 %v708, 32
    %v711 = vpop.permute.xlu0 %710
    %v713 = vadd.f32 %v703, %v711
    %v714 = vtanh.pop %v713
    %716 = vrot.lane.b32.xlu0 %v714, 64
    %v717 = vpop.permute.xlu0 %716
    %v719 = vmul.f32 %v702, %v717
    %721 = vrot.lane.b32.xlu0 %v719, 32
    %v722 = vpop.permute.xlu0 %721
    %v723 = vrot.slane %v42, 7
    %v725 = vsel %vm43, %v722, 0
    %727 = vmatprep.subr.mxu0 0.0
    %728 = vmatpush1.msra.mxu0 %v26
    %729 = vmatprep.subr.mxu0 0.0
    %730 = vmatpush1.msra.mxu0 %v27
    %731 = vmatprep.subr.mxu0 0.0
    %732 = vmatpush1.msra.mxu0 %v28
    %733 = vmatprep.subr.mxu0 0.0
    %734 = vmatpush1.msra.mxu0 %v29
    %735 = vmatprep.subr.mxu0 0.0
    %736 = vmatpush1.msra.mxu0 0.0
    %737 = vmatprep.subr.mxu0 0.0
    %738 = vmatpush1.msra.mxu0 0.0
    %739 = vmatprep.subr.mxu0 0.0
    %740 = vmatpush1.msra.mxu0 0.0
    %741 = vmatprep.subr.mxu0 0.0
    %742 = vmatpush1.msra.mxu0 0.0
    %743 = vmatprep.subr.mxu0 0.0
    %744 = vmatpush1.msra.mxu0 0.0
    %745 = vmatprep.subr.mxu0 0.0
    %746 = vmatpush1.msra.mxu0 0.0
    %747 = vmatprep.subr.mxu0 0.0
    %748 = vmatpush1.msra.mxu0 0.0
    %749 = vmatprep.subr.mxu0 0.0
    %750 = vmatpush1.msra.mxu0 0.0
    %751 = vmatprep.subr.mxu0 0.0
    %752 = vmatpush1.msra.mxu0 0.0
    %753 = vmatprep.subr.mxu0 0.0
    %754 = vmatpush1.msra.mxu0 0.0
    %755 = vmatprep.subr.mxu0 0.0
    %756 = vmatpush1.msra.mxu0 0.0
    %757 = vmatprep.subr.mxu0 0.0
    %758 = vmatpush1.msra.mxu0 0.0
    %759 = vmatprep.subr.mxu0 0.0
    %760 = vmatpush1.msra.mxu0 0.0
    %761 = vmatprep.subr.mxu0 0.0
    %762 = vmatpush1.msra.mxu0 0.0
    %763 = vmatprep.subr.mxu0 0.0
    %764 = vmatpush1.msra.mxu0 0.0
    %765 = vmatprep.subr.mxu0 0.0
    %766 = vmatpush1.msra.mxu0 0.0
    %767 = vmatprep.subr.mxu0 0.0
    %768 = vmatpush1.msra.mxu0 0.0
    %769 = vmatprep.subr.mxu0 0.0
    %770 = vmatpush1.msra.mxu0 0.0
    %771 = vmatprep.subr.mxu0 0.0
    %772 = vmatpush1.msra.mxu0 0.0
    %773 = vmatprep.subr.mxu0 0.0
    %774 = vmatpush1.msra.mxu0 0.0
    %775 = vmatprep.subr.mxu0 0.0
    %776 = vmatpush1.msra.mxu0 0.0
    %777 = vmatprep.subr.mxu0 0.0
    %778 = vmatpush1.msra.mxu0 0.0
    %779 = vmatprep.subr.mxu0 0.0
    %780 = vmatpush1.msra.mxu0 0.0
    %781 = vmatprep.subr.mxu0 0.0
    %782 = vmatpush1.msra.mxu0 0.0
    %783 = vmatprep.subr.mxu0 0.0
    %784 = vmatpush1.msra.mxu0 0.0
    %785 = vmatprep.subr.mxu0 0.0
    %786 = vmatpush1.msra.mxu0 0.0
    %787 = vmatprep.subr.mxu0 0.0
    %788 = vmatpush1.msra.mxu0 0.0
    %789 = vmatprep.subr.mxu0 0.0
    %790 = vmatpush1.msra.mxu0 0.0
    %791 = vmatprep.mubr.f32.mxu0 0.0
    %792 = vmatmul.mubr.f32.gmra.mrb[0].mxu0 %v725
    %v793 = vpop.f32.mrb[0].mxu0
    %v794 = vadd.f32 %v723, %v793
    %v795 = vpop.f32.mrb[0].mxu0
    %796 = vdwg.mxu0
    %v797 = vtanh.pop %v794
    %v798 = vmul.f32 %v797, 0.5
    %v799 = vadd.f32 %v798, 0.5
    %v800 = vmul.f32 %v799, %v713
    %802 = vrot.lane.b32.xlu0 %v797, 64
    %v803 = vpop.permute.xlu0 %802
    %v805 = vmul.f32 %v799, %v803
    %807 = vrot.lane.b32.xlu0 %v805, 32
    %v808 = vpop.permute.xlu0 %807
    %v810 = vadd.f32 %v800, %v808
    %v811 = vtanh.pop %v810
    %813 = vrot.lane.b32.xlu0 %v811, 64
    %v814 = vpop.permute.xlu0 %813
    %v816 = vmul.f32 %v799, %v814
    %v817 = vld [vmem:[#allocation2 + $0x2a] sm:$0x1]
    %v818 = vld [vmem:[#allocation2 + $0x2b] sm:$0x1]
    %820 = vrot.lane.b32.xlu0 %v817, 96
    %v821 = vpop.permute.xlu0 %820
    %v823 = vmul.f32 %v816, %v821
    %825 = vrot.lane.b32.xlu0 %v823, 32
    %v826 = vpop.permute.xlu0 %825
    %vm828 = vcmask 253952
    %v829 = vsel %vm828, %v826, 0.0
    %830 = vadd.xlane.f32.xlu0 %v829
    %v831 = vpop.xlane.xlu0 %830
    %v832 = vadd.f32 %v831, %v818
    %vm833 = vcmask 0
    %834 = vst.msk [vmem:[#allocation5] sm:$0x1] %vm833, %v832
    %836 = vrot.lane.b32.xlu0 %v816, 32
    %v837 = vpop.permute.xlu0 %836
    %839 = vst.msk [vmem:[#allocation6] sm:$0x1] %vm828, %v837
    %841 = vrot.lane.b32.xlu0 %v810, 96
    %v842 = vpop.permute.xlu0 %841
    %844 = vst.msk [vmem:[#allocation6 + $0x1] sm:$0x1] %vm828, %v842
    // Predicated region
    $region10: #{tpu_custom_call.1} parent=1 // pred_check
      _
    $region11: #{tpu_custom_call.1} parent=1 // pred_check_branch
      %846 = sbr.rel (0) target = $region13
    $region12: #{tpu_custom_call.1} parent=1 // pred_region
      %s848 = ssub.s32 16, 16
      %849 = vsyncadd [#allocation4], %s848
      %s851 = sshll.u32 [#allocation5], 4
      %s852 = int_to_ptr.vmem [resolvable:$true] %s851
      %854 = dma.vmem_to_hbm [thread:$0]  %s852, 16, %s1, [#allocation4]
    $region13: #{tpu_custom_call.1} parent=1 // pred_fallthru
      _
    // Predicated region
    $region14: #{tpu_custom_call.1} parent=1 // pred_check
      _
    $region15: #{tpu_custom_call.1} parent=1 // pred_check_branch
      %856 = sbr.rel (0) target = $region17
    $region16: #{tpu_custom_call.1} parent=1 // pred_region
      %s858 = ssub.s32 32, 32
      %859 = vsyncadd [#allocation7], %s858
      %s861 = sshll.u32 [#allocation6], 4
      %s862 = int_to_ptr.vmem [resolvable:$true] %s861
      %864 = dma.vmem_to_hbm [thread:$0]  %s862, 32, %s2, [#allocation7]
    $region17: #{tpu_custom_call.1} parent=1 // pred_fallthru
      _
    // Predicated region
    $region18: #{tpu_custom_call.1} parent=1 // pred_check
      _
    $region19: #{tpu_custom_call.1} parent=1 // pred_check_branch
      %866 = sbr.rel (0) target = $region21
    $region20: #{tpu_custom_call.1} parent=1 // pred_region
      %867 = dma.done [#allocation4], 16
    $region21: #{tpu_custom_call.1} parent=1 // pred_fallthru
      _
    // Predicated region
    $region22: #{tpu_custom_call.1} parent=1 // pred_check
      _
    $region23: #{tpu_custom_call.1} parent=1 // pred_check_branch
      %869 = sbr.rel (0) target = $region25
    $region24: #{tpu_custom_call.1} parent=1 // pred_region
      %870 = dma.done [#allocation7], 32
    $region25: #{tpu_custom_call.1} parent=1 // pred_fallthru
      _
    %871 = vsyncpa [#allocation3], 1
    %872 = vsyncpa [#allocation4], 1
    %873 = vsyncpa [#allocation7], 1

</llo_original>
